<compile_context>
chip_gen: v7x
topology: tpu7x:2x2x1
jax: 0.10.0
libtpu: 0.0.40
codegen_flags: <defaults>
</compile_context>

<pallas_src>
import functools
import math

import jax
import jax.numpy as jnp
from jax.experimental import pallas as pl
from jax.experimental.pallas import tpu as pltpu

EPS = 1e-5
LANES = 128                      # padded feature width (>= 100, one lane tile)
F_IN, F1, F2, F3 = 100, 50, 25, 1


def _round_up(x, m):
    return (x + m - 1) // m * m


def _chip_budget():
    """(tb_max, vmem_limit_bytes), gated on physical VMEM (v5e/v6e: 128 MiB, v7x: 64 MiB/TC)."""
    try:
        vmem = int(pltpu.get_tpu_info().vmem_capacity_bytes)
    except Exception:
        vmem = 64 * 1024 * 1024          # conservative fallback (v7x-sized VMEM)
    if vmem >= 100 * 1024 * 1024:        # v5e / v6e
        return 4096, 64 * 1024 * 1024
    return 2048, 32 * 1024 * 1024        # v7x


def _bn_relu_from_stats(h, s, sq, gamma, beta, inv_n):
    """Fold training-mode BN affine (from sum / sum-of-squares) + ReLU."""
    mu = s * inv_n
    var = jnp.maximum(sq * inv_n - mu * mu, 0.0)     # clamp f32 cancellation
    scale = gamma * jax.lax.rsqrt(var + EPS)
    shift = beta - mu * scale
    return jnp.maximum(h * scale + shift, 0.0)


# ---------------------------------------------------------------------------
# Fast path: whole (padded) batch in one tile -> one grid step, no recompute.
# Outputs: pre-BN layer-3 logit (lane 0) and layer-3 [sum, sumsq] (2, 128).
# ---------------------------------------------------------------------------
def _fused_kernel(x_ref, w_ref, gb_ref, logit_ref, stats3_ref, *, true_b, needs_mask):
    inv_n = 1.0 / float(true_b)
    x = x_ref[...]                                               # (tb, 128)

    if needs_mask:
        tb = x_ref.shape[0]
        row_ids = jax.lax.broadcasted_iota(jnp.int32, (tb, 1), 0)
        valid = (row_ids < true_b).astype(jnp.float32)           # (tb, 1)
        mask = lambda h: h * valid
    else:
        mask = lambda h: h

    def bn_relu(h, layer):                                       # layer in {0, 1}
        hm = mask(h)
        s = jnp.sum(hm, axis=0, keepdims=True)
        sq = jnp.sum(hm * h, axis=0, keepdims=True)
        gamma = gb_ref[pl.ds(layer, 1), :]
        beta = gb_ref[pl.ds(3 + layer, 1), :]
        return _bn_relu_from_stats(h, s, sq, gamma, beta, inv_n)

    h1 = jnp.dot(x, w_ref[0], preferred_element_type=jnp.float32)
    h2 = jnp.dot(bn_relu(h1, 0), w_ref[1], preferred_element_type=jnp.float32)
    h3 = jnp.dot(bn_relu(h2, 1), w_ref[2], preferred_element_type=jnp.float32)

    h3m = mask(h3)
    stats3_ref[pl.ds(0, 1), :] = jnp.sum(h3m, axis=0, keepdims=True)
    stats3_ref[pl.ds(1, 1), :] = jnp.sum(h3m * h3, axis=0, keepdims=True)
    logit_ref[...] = h3[:, 0:1]                                  # valid feature = lane 0


# ---------------------------------------------------------------------------
# Phased path: grid = (3, nb); exactly-global BN stats across batch tiles.
#   phase 0: accumulate BN1 stats of h1 = x @ W1
#   phase 1: accumulate BN2 stats of h2 = relu(bn1(h1)) @ W2
#   phase 2: h3 = relu(bn2(h2)) @ W3; accumulate BN3 stats; write pre-BN logit
# stats_ref rows: [sum1, sumsq1, sum2, sumsq2, sum3, sumsq3, -, -]
# ---------------------------------------------------------------------------
def _phased_kernel(x_ref, w_ref, gb_ref, logit_ref, stats3_ref, stats_ref, *, true_b, tb):
    p = pl.program_id(0)
    i = pl.program_id(1)
    nb = pl.num_programs(1)

    @pl.when(jnp.logical_and(p == 0, i == 0))
    def _():
        stats_ref[...] = jnp.zeros_like(stats_ref)

    inv_n = 1.0 / float(true_b)
    x = x_ref[...]                                               # (tb, 128)

    # rows of this tile that belong to the real batch (tail tile may be padded)
    row_ids = jax.lax.broadcasted_iota(jnp.int32, (tb, 1), 0)
    valid = (row_ids < (true_b - i * tb)).astype(jnp.float32)    # (tb, 1)

    def accum(h, layer):                                         # layer is a Python int
        hm = h * valid
        stats_ref[pl.ds(2 * layer, 1), :] += jnp.sum(hm, axis=0, keepdims=True)
        stats_ref[pl.ds(2 * layer + 1, 1), :] += jnp.sum(hm * h, axis=0, keepdims=True)

    def bn_relu(h, layer):
        s = stats_ref[pl.ds(2 * layer, 1), :]
        sq = stats_ref[pl.ds(2 * layer + 1, 1), :]
        gamma = gb_ref[pl.ds(layer, 1), :]
        beta = gb_ref[pl.ds(3 + layer, 1), :]
        return _bn_relu_from_stats(h, s, sq, gamma, beta, inv_n)

    def h1():
        return jnp.dot(x, w_ref[0], preferred_element_type=jnp.float32)

    def h2():
        return jnp.dot(bn_relu(h1(), 0), w_ref[1], preferred_element_type=jnp.float32)

    def h3():
        return jnp.dot(bn_relu(h2(), 1), w_ref[2], preferred_element_type=jnp.float32)

    # NOTE: logit_ref is intentionally NOT written in phases 0/1 (no masked
    # zero-stores); every output tile is overwritten in phase 2.
    @pl.when(p == 0)
    def _():
        accum(h1(), 0)

    @pl.when(p == 1)
    def _():
        accum(h2(), 1)

    @pl.when(p == 2)
    def _():
        h = h3()
        accum(h, 2)
        logit_ref[...] = h[:, 0:1]

    @pl.when(jnp.logical_and(p == 2, i == nb - 1))
    def _():
        stats3_ref[...] = stats_ref[pl.ds(4, 2), :]


def simple_discriminator(x, params, *, tb_max=None):
    """x: (B, 100, 1) float32 -> (B, 1, 1) float32 (training-mode BatchNorm forward)."""
    x2d = jnp.squeeze(x, axis=-1).astype(jnp.float32)            # (B, 100)
    b = x2d.shape[0]

    default_tb_max, vmem_limit = _chip_budget()
    if tb_max is None:
        tb_max = default_tb_max

    if b <= tb_max:
        tb = max(8, _round_up(b, 8))
        b_pad, nb = tb, 1
    else:
        tb = tb_max
        b_pad = _round_up(b, tb)
        nb = b_pad // tb

    # Zero-pad batch (masked out of BN stats) and features (lane-dense width 128).
    x_pad = jnp.pad(x2d, ((0, b_pad - b), (0, LANES - F_IN)))

    # Pack all weights into one zero-padded lane-dense stack. Linear biases are
    # dropped: every Linear feeds a training-mode BatchNorm1d whose mean
    # subtraction cancels any per-feature constant, so they never change the output.
    w = jnp.zeros((3, LANES, LANES), jnp.float32)
    w = w.at[0, :F_IN, :F1].set(params["w1"])
    w = w.at[1, :F1, :F2].set(params["w2"])
    w = w.at[2, :F2, :F3].set(params["w3"])

    # gamma/beta slab for BN1/BN2 (BN3 is a scalar affine applied outside).
    gb = jnp.zeros((8, LANES), jnp.float32)
    gb = gb.at[0, :F1].set(params["g1"])
    gb = gb.at[1, :F2].set(params["g2"])
    gb = gb.at[3, :F1].set(params["be1"])
    gb = gb.at[4, :F2].set(params["be2"])

    out_shape = (jax.ShapeDtypeStruct((b_pad, 1), jnp.float32),   # pre-BN3 logit
                 jax.ShapeDtypeStruct((2, LANES), jnp.float32))   # [sum3, sumsq3]

    if nb == 1:
        kernel = functools.partial(_fused_kernel, true_b=b, needs_mask=(b_pad != b))
        logit, stats3 = pl.pallas_call(
            kernel,
            out_shape=out_shape,
            grid_spec=pltpu.PrefetchScalarGridSpec(
                num_scalar_prefetch=0,
                grid=(1,),
                in_specs=[
                    pl.BlockSpec((tb, LANES), lambda s: (0, 0)),
                    pl.BlockSpec((3, LANES, LANES), lambda s: (0, 0, 0)),
                    pl.BlockSpec((8, LANES), lambda s: (0, 0)),
                ],
                out_specs=[
                    pl.BlockSpec((tb, 1), lambda s: (0, 0)),
                    pl.BlockSpec((2, LANES), lambda s: (0, 0)),
                ],
            ),
            compiler_params=pltpu.CompilerParams(
                dimension_semantics=("arbitrary",),
                vmem_limit_bytes=vmem_limit,
            ),
        )(x_pad, w, gb)
    else:
        kernel = functools.partial(_phased_kernel, true_b=b, tb=tb)
        logit, stats3 = pl.pallas_call(
            kernel,
            out_shape=out_shape,
            grid_spec=pltpu.PrefetchScalarGridSpec(
                num_scalar_prefetch=0,
                grid=(3, nb),
                in_specs=[
                    pl.BlockSpec((tb, LANES), lambda p, i: (i, 0)),
                    pl.BlockSpec((3, LANES, LANES), lambda p, i: (0, 0, 0)),
                    pl.BlockSpec((8, LANES), lambda p, i: (0, 0)),
                ],
                out_specs=[
                    pl.BlockSpec((tb, 1), lambda p, i: (i, 0)),
                    pl.BlockSpec((2, LANES), lambda p, i: (0, 0)),
                ],
                scratch_shapes=[pltpu.VMEM((8, LANES), jnp.float32)],
            ),
            compiler_params=pltpu.CompilerParams(
                dimension_semantics=("arbitrary", "arbitrary"),
                vmem_limit_bytes=vmem_limit,
            ),
        )(x_pad, w, gb)

    # BN3 (single feature) + sigmoid epilogue: tiny fused XLA elementwise op.
    inv_n = 1.0 / b
    mu3 = stats3[0, 0] * inv_n
    var3 = jnp.maximum(stats3[1, 0] * inv_n - mu3 * mu3, 0.0)
    scale3 = params["g3"][0] * jax.lax.rsqrt(var3 + EPS)
    shift3 = params["be3"][0] - mu3 * scale3
    y = jax.nn.sigmoid(logit[:b] * scale3 + shift3)
    return y[:, :, None]                                         # (B, 1, 1)


def init_params(key):
    """PyTorch-default-like init.

    Linear: W, b ~ U(-1/sqrt(fan_in), 1/sqrt(fan_in)); W stored (in, out).
    The kernel ignores b1/b2/b3 (cancelled by training-mode BN); the reference
    uses them, so the comparison below verifies that cancellation numerically.
    BatchNorm: gamma = 1, beta = 0.
    """
    dims = [(F_IN, F1), (F1, F2), (F2, F3)]
    params = {}
    keys = jax.random.split(key, 2 * len(dims))
    for i, (fan_in, fan_out) in enumerate(dims):
        bound = 1.0 / math.sqrt(fan_in)
        params[f"w{i + 1}"] = jax.random.uniform(
            keys[2 * i], (fan_in, fan_out), minval=-bound, maxval=bound, dtype=jnp.float32)
        params[f"b{i + 1}"] = jax.random.uniform(
            keys[2 * i + 1], (fan_out,), minval=-bound, maxval=bound, dtype=jnp.float32)
        params[f"g{i + 1}"] = jnp.ones((fan_out,), jnp.float32)
        params[f"be{i + 1}"] = jnp.zeros((fan_out,), jnp.float32)
    return params


def _reference(x, params):
    """Plain-JAX reference: Linear (with bias) + training-mode BN + ReLU/Sigmoid."""
    h = jnp.squeeze(x, axis=-1)
    for l, relu in ((1, True), (2, True), (3, False)):
        h = h @ params[f"w{l}"] + params[f"b{l}"]
        mu = jnp.mean(h, axis=0, keepdims=True)
        var = jnp.mean((h - mu) ** 2, axis=0, keepdims=True)
        h = (h - mu) * jax.lax.rsqrt(var + EPS) * params[f"g{l}"] + params[f"be{l}"]
        if relu:
            h = jnp.maximum(h, 0.0)
    return jax.nn.sigmoid(h)[:, :, None]


if __name__ == "__main__":
    key = jax.random.PRNGKey(0)
    pkey, xkey = jax.random.split(key)
    params = init_params(pkey)

    # --- common case: fused single-step path (nb == 1) ---
    B = 8
    x = jax.random.normal(xkey, (B, 100, 1), dtype=jnp.float32)
    y = simple_discriminator(x, params)
    jax.block_until_ready(y)
    y_ref = _reference(x, params)
    assert y.shape == (B, 1, 1), y.shape
    assert bool(jnp.all(jnp.isfinite(y)))
    assert bool(jnp.all((y >= 0.0) & (y <= 1.0)))
    assert bool(jnp.allclose(y, y_ref, atol=1e-4, rtol=1e-4)), (y, y_ref)

    # --- phased multi-tile path, forced to tiny tiles so it runs at small shapes ---
    B2 = 20
    x2 = jax.random.normal(jax.random.PRNGKey(1), (B2, 100, 1), dtype=jnp.float32)
    y2 = simple_discriminator(x2, params, tb_max=8)   # -> tb=8, nb=3, padded tail tile
    jax.block_until_ready(y2)
    y2_ref = _reference(x2, params)
    assert y2.shape == (B2, 1, 1), y2.shape
    assert bool(jnp.all(jnp.isfinite(y2)))
    assert bool(jnp.allclose(y2, y2_ref, atol=1e-4, rtol=1e-4)), (y2, y2_ref)

    print("KERNEL_OK")
</pallas_src>

<mosaic_0001>
module attributes {stable_mosaic.version = 11 : i64} {
  func.func @_fused_kernel(%arg0: i32, %arg1: memref<8x128xf32, #tpu.memory_space<vmem>>, %arg2: memref<3x128x128xf32, #tpu.memory_space<vmem>>, %arg3: memref<8x128xf32, #tpu.memory_space<vmem>>, %arg4: memref<8x1xf32, #tpu.memory_space<vmem>>, %arg5: memref<2x128xf32, #tpu.memory_space<vmem>>) attributes {dimension_semantics = [#tpu.dimension_semantics<arbitrary>], iteration_bounds = array<i64: 1>, scalar_prefetch = 0 : i64, scratch_operands = 0 : i64, tpu.core_type = #tpu.core_type<tc>, window_params = [{pipeline_mode = #tpu.pipeline_mode<synchronous>, transform_indices = @transform_0, window_bounds = array<i64: 8, 128>}, {pipeline_mode = #tpu.pipeline_mode<synchronous>, transform_indices = @transform_1, window_bounds = array<i64: 3, 128, 128>}, {pipeline_mode = #tpu.pipeline_mode<synchronous>, transform_indices = @transform_2, window_bounds = array<i64: 8, 128>}, {pipeline_mode = #tpu.pipeline_mode<synchronous>, transform_indices = @transform_3, window_bounds = array<i64: 8, 1>}, {pipeline_mode = #tpu.pipeline_mode<synchronous>, transform_indices = @transform_4, window_bounds = array<i64: 2, 128>}]} {
    %c0 = arith.constant 0 : index
    %c0_0 = arith.constant 0 : index
    %0 = vector.load %arg1[%c0, %c0_0] : memref<8x128xf32, #tpu.memory_space<vmem>>, vector<8x128xf32>
    %c0_1 = arith.constant 0 : index
    %c0_2 = arith.constant 0 : index
    %c0_3 = arith.constant 0 : index
    %1 = vector.load %arg2[%c0_1, %c0_2, %c0_3] : memref<3x128x128xf32, #tpu.memory_space<vmem>>, vector<1x128x128xf32>
    %2 = vector.shape_cast %1 : vector<1x128x128xf32> to vector<128x128xf32>
    %cst = arith.constant dense<0.000000e+00> : vector<8x128xf32>
    %3 = tpu.matmul %0, %2, %cst {dimension_numbers = #tpu.dot_dimension_numbers<[1], [0], [0], [1], [0, 0, 1, 1], [], []>} : vector<8x128xf32>, vector<128x128xf32>, vector<8x128xf32> -> vector<8x128xf32>
    %cst_4 = arith.constant dense<0.000000e+00> : vector<128xf32>
    %4 = vector.multi_reduction <add>, %3, %cst_4 [0] : vector<8x128xf32> to vector<128xf32>
    %5 = vector.shape_cast %4 : vector<128xf32> to vector<1x128xf32>
    %6 = arith.mulf %3, %3 : vector<8x128xf32>
    %cst_5 = arith.constant dense<0.000000e+00> : vector<128xf32>
    %7 = vector.multi_reduction <add>, %6, %cst_5 [0] : vector<8x128xf32> to vector<128xf32>
    %8 = vector.shape_cast %7 : vector<128xf32> to vector<1x128xf32>
    %c0_6 = arith.constant 0 : index
    %c0_7 = arith.constant 0 : index
    %9 = vector.load %arg3[%c0_6, %c0_7] : memref<8x128xf32, #tpu.memory_space<vmem>>, vector<1x128xf32>
    %c3 = arith.constant 3 : index
    %c0_8 = arith.constant 0 : index
    %10 = vector.load %arg3[%c3, %c0_8] : memref<8x128xf32, #tpu.memory_space<vmem>>, vector<1x128xf32>
    %cst_9 = arith.constant 1.250000e-01 : f32
    %11 = vector.broadcast %cst_9 : f32 to vector<1x128xf32>
    %12 = arith.mulf %5, %11 : vector<1x128xf32>
    %cst_10 = arith.constant 1.250000e-01 : f32
    %13 = vector.broadcast %cst_10 : f32 to vector<1x128xf32>
    %14 = arith.mulf %8, %13 : vector<1x128xf32>
    %15 = arith.mulf %12, %12 : vector<1x128xf32>
    %16 = arith.subf %14, %15 : vector<1x128xf32>
    %cst_11 = arith.constant 0.000000e+00 : f32
    %17 = vector.broadcast %cst_11 : f32 to vector<1x128xf32>
    %18 = arith.maximumf %16, %17 : vector<1x128xf32>
    %cst_12 = arith.constant 9.99999974E-6 : f32
    %19 = vector.broadcast %cst_12 : f32 to vector<1x128xf32>
    %20 = arith.addf %18, %19 : vector<1x128xf32>
    %21 = math.rsqrt %20 : vector<1x128xf32>
    %22 = arith.mulf %9, %21 : vector<1x128xf32>
    %23 = arith.mulf %12, %22 : vector<1x128xf32>
    %24 = arith.subf %10, %23 : vector<1x128xf32>
    %25 = vector.broadcast %22 : vector<1x128xf32> to vector<8x128xf32>
    %26 = arith.mulf %3, %25 : vector<8x128xf32>
    %27 = vector.broadcast %24 : vector<1x128xf32> to vector<8x128xf32>
    %28 = arith.addf %26, %27 : vector<8x128xf32>
    %cst_13 = arith.constant 0.000000e+00 : f32
    %29 = vector.broadcast %cst_13 : f32 to vector<8x128xf32>
    %30 = arith.maximumf %28, %29 : vector<8x128xf32>
    %c1 = arith.constant 1 : index
    %c0_14 = arith.constant 0 : index
    %c0_15 = arith.constant 0 : index
    %31 = vector.load %arg2[%c1, %c0_14, %c0_15] : memref<3x128x128xf32, #tpu.memory_space<vmem>>, vector<1x128x128xf32>
    %32 = vector.shape_cast %31 : vector<1x128x128xf32> to vector<128x128xf32>
    %cst_16 = arith.constant dense<0.000000e+00> : vector<8x128xf32>
    %33 = tpu.matmul %30, %32, %cst_16 {dimension_numbers = #tpu.dot_dimension_numbers<[1], [0], [0], [1], [0, 0, 1, 1], [], []>} : vector<8x128xf32>, vector<128x128xf32>, vector<8x128xf32> -> vector<8x128xf32>
    %cst_17 = arith.constant dense<0.000000e+00> : vector<128xf32>
    %34 = vector.multi_reduction <add>, %33, %cst_17 [0] : vector<8x128xf32> to vector<128xf32>
    %35 = vector.shape_cast %34 : vector<128xf32> to vector<1x128xf32>
    %36 = arith.mulf %33, %33 : vector<8x128xf32>
    %cst_18 = arith.constant dense<0.000000e+00> : vector<128xf32>
    %37 = vector.multi_reduction <add>, %36, %cst_18 [0] : vector<8x128xf32> to vector<128xf32>
    %38 = vector.shape_cast %37 : vector<128xf32> to vector<1x128xf32>
    %c1_19 = arith.constant 1 : index
    %c0_20 = arith.constant 0 : index
    %39 = vector.load %arg3[%c1_19, %c0_20] : memref<8x128xf32, #tpu.memory_space<vmem>>, vector<1x128xf32>
    %c4 = arith.constant 4 : index
    %c0_21 = arith.constant 0 : index
    %40 = vector.load %arg3[%c4, %c0_21] : memref<8x128xf32, #tpu.memory_space<vmem>>, vector<1x128xf32>
    %cst_22 = arith.constant 1.250000e-01 : f32
    %41 = vector.broadcast %cst_22 : f32 to vector<1x128xf32>
    %42 = arith.mulf %35, %41 : vector<1x128xf32>
    %cst_23 = arith.constant 1.250000e-01 : f32
    %43 = vector.broadcast %cst_23 : f32 to vector<1x128xf32>
    %44 = arith.mulf %38, %43 : vector<1x128xf32>
    %45 = arith.mulf %42, %42 : vector<1x128xf32>
    %46 = arith.subf %44, %45 : vector<1x128xf32>
    %cst_24 = arith.constant 0.000000e+00 : f32
    %47 = vector.broadcast %cst_24 : f32 to vector<1x128xf32>
    %48 = arith.maximumf %46, %47 : vector<1x128xf32>
    %cst_25 = arith.constant 9.99999974E-6 : f32
    %49 = vector.broadcast %cst_25 : f32 to vector<1x128xf32>
    %50 = arith.addf %48, %49 : vector<1x128xf32>
    %51 = math.rsqrt %50 : vector<1x128xf32>
    %52 = arith.mulf %39, %51 : vector<1x128xf32>
    %53 = arith.mulf %42, %52 : vector<1x128xf32>
    %54 = arith.subf %40, %53 : vector<1x128xf32>
    %55 = vector.broadcast %52 : vector<1x128xf32> to vector<8x128xf32>
    %56 = arith.mulf %33, %55 : vector<8x128xf32>
    %57 = vector.broadcast %54 : vector<1x128xf32> to vector<8x128xf32>
    %58 = arith.addf %56, %57 : vector<8x128xf32>
    %cst_26 = arith.constant 0.000000e+00 : f32
    %59 = vector.broadcast %cst_26 : f32 to vector<8x128xf32>
    %60 = arith.maximumf %58, %59 : vector<8x128xf32>
    %c2 = arith.constant 2 : index
    %c0_27 = arith.constant 0 : index
    %c0_28 = arith.constant 0 : index
    %61 = vector.load %arg2[%c2, %c0_27, %c0_28] : memref<3x128x128xf32, #tpu.memory_space<vmem>>, vector<1x128x128xf32>
    %62 = vector.shape_cast %61 : vector<1x128x128xf32> to vector<128x128xf32>
    %cst_29 = arith.constant dense<0.000000e+00> : vector<8x128xf32>
    %63 = tpu.matmul %60, %62, %cst_29 {dimension_numbers = #tpu.dot_dimension_numbers<[1], [0], [0], [1], [0, 0, 1, 1], [], []>} : vector<8x128xf32>, vector<128x128xf32>, vector<8x128xf32> -> vector<8x128xf32>
    %cst_30 = arith.constant dense<0.000000e+00> : vector<128xf32>
    %64 = vector.multi_reduction <add>, %63, %cst_30 [0] : vector<8x128xf32> to vector<128xf32>
    %65 = vector.shape_cast %64 : vector<128xf32> to vector<1x128xf32>
    %c0_31 = arith.constant 0 : index
    %c0_32 = arith.constant 0 : index
    %66 = vector.load %arg5[%c0_31, %c0_32] : memref<2x128xf32, #tpu.memory_space<vmem>>, vector<1x128xf32>
    tpu.vector_store %arg5[%c0_31, %c0_32], %65 {strides = array<i32>} : memref<2x128xf32, #tpu.memory_space<vmem>>, vector<1x128xf32>,
    %67 = arith.mulf %63, %63 : vector<8x128xf32>
    %cst_33 = arith.constant dense<0.000000e+00> : vector<128xf32>
    %68 = vector.multi_reduction <add>, %67, %cst_33 [0] : vector<8x128xf32> to vector<128xf32>
    %69 = vector.shape_cast %68 : vector<128xf32> to vector<1x128xf32>
    %c1_34 = arith.constant 1 : index
    %c0_35 = arith.constant 0 : index
    %70 = vector.load %arg5[%c1_34, %c0_35] : memref<2x128xf32, #tpu.memory_space<vmem>>, vector<1x128xf32>
    tpu.vector_store %arg5[%c1_34, %c0_35], %69 {strides = array<i32>} : memref<2x128xf32, #tpu.memory_space<vmem>>, vector<1x128xf32>,
    %71 = vector.extract_strided_slice %63 {offsets = [0, 0], sizes = [8, 1], strides = [1, 1]} : vector<8x128xf32> to vector<8x1xf32>
    %c0_36 = arith.constant 0 : index
    %c0_37 = arith.constant 0 : index
    %72 = vector.load %arg4[%c0_36, %c0_37] : memref<8x1xf32, #tpu.memory_space<vmem>>, vector<8x1xf32>
    tpu.vector_store %arg4[%c0_36, %c0_37], %71 {strides = array<i32>} : memref<8x1xf32, #tpu.memory_space<vmem>>, vector<8x1xf32>,
    return
  }
  func.func @transform_0(%arg0: i32) -> (i32, i32) {
    %c0_i32 = arith.constant 0 : i32
    %c0_i32_0 = arith.constant 0 : i32
    %c0_i32_1 = arith.constant 0 : i32
    return %c0_i32, %c0_i32_0 : i32, i32
  }
  func.func @transform_1(%arg0: i32) -> (i32, i32, i32) {
    %c0_i32 = arith.constant 0 : i32
    %c0_i32_0 = arith.constant 0 : i32
    %c0_i32_1 = arith.constant 0 : i32
    %c0_i32_2 = arith.constant 0 : i32
    return %c0_i32, %c0_i32_0, %c0_i32_1 : i32, i32, i32
  }
  func.func @transform_2(%arg0: i32) -> (i32, i32) {
    %c0_i32 = arith.constant 0 : i32
    %c0_i32_0 = arith.constant 0 : i32
    %c0_i32_1 = arith.constant 0 : i32
    return %c0_i32, %c0_i32_0 : i32, i32
  }
  func.func @transform_3(%arg0: i32) -> (i32, i32) {
    %c0_i32 = arith.constant 0 : i32
    %c0_i32_0 = arith.constant 0 : i32
    %c0_i32_1 = arith.constant 0 : i32
    return %c0_i32, %c0_i32_0 : i32, i32
  }
  func.func @transform_4(%arg0: i32) -> (i32, i32) {
    %c0_i32 = arith.constant 0 : i32
    %c0_i32_0 = arith.constant 0 : i32
    %c0_i32_1 = arith.constant 0 : i32
    return %c0_i32, %c0_i32_0 : i32, i32
  }
}

</mosaic_0001>

<llo_original>
// kernel: tpu_custom_call.1
$region0: #{tpu_custom_call.1}
  #allocation0 [shape = 'u32[]', space=smem, size = 0x4, offset = 0x4, fixed_abs, tag = 'smem constant byte address 0x4 - core index']
  #allocation1 [shape = 'u32[144,128]{1,0:T(1,128)}', space=vmem, size = 0x12000, scoped, tag = 'internal scratch']
  %s0 = inlined_call_operand.hbm [shape: f32[8,128], index: 0, kind: input, shape index: {}]
  %s1 = inlined_call_operand.hbm [shape: f32[3,128,128], index: 1, kind: input, shape index: {}]
  %s2 = inlined_call_operand.hbm [shape: f32[8,128], index: 2, kind: input, shape index: {}]
  %s3 = inlined_call_operand.vmem [shape: f32[8,1], index: 3, kind: output, shape index: {0}]
  %s4 = inlined_call_operand.hbm [shape: f32[2,128], index: 4, kind: output, shape index: {1}]
  %5 = xla_tuple %s3, %s4
  %s6 = sld [smem:[#allocation0]]
  $region42: #{tpu_custom_call.1} parent=0
    _
  %s8 = ssub.s32 1, %s6
  %s9 = scalar_select 0, %s8, %s6
  $region1: #{tpu_custom_call.1} parent=0
    #allocation2 [shape = 'u8[4096]{0}', space=vmem, size = 0x1000, scoped, tag = 'input window, operand 0, single buffered']
    #allocation3 [shape = 's32[1]{0}', space=sflag, size = 0x4, scoped, tag = 'scoped memory for tpu_custom_call.1']
    #allocation4 [shape = 's32[1]{0}', space=sflag, size = 0x4, scoped, tag = 'scoped memory for tpu_custom_call.1']
    #allocation5 [shape = 'u8[196608]{0}', space=vmem, size = 0x30000, scoped, tag = 'input window, operand 1, single buffered']
    #allocation6 [shape = 's32[1]{0}', space=sflag, size = 0x4, scoped, tag = 'scoped memory for tpu_custom_call.1']
    #allocation7 [shape = 'u8[4096]{0}', space=vmem, size = 0x1000, scoped, tag = 'input window, operand 2, single buffered']
    #allocation8 [shape = 'u8[1024]{0}', space=vmem, size = 0x400, scoped, tag = 'output window, operand 1, single buffered']
    %10 = vsyncpa [#allocation3], 0
    %11 = vsyncpa [#allocation6], 0
    %12 = vsyncpa [#allocation4], 0
    // Predicated region
    $region2: #{tpu_custom_call.1} parent=1 // pred_check
      _
    $region3: #{tpu_custom_call.1} parent=1 // pred_check_branch
      %14 = sbr.rel (0) target = $region5
    $region4: #{tpu_custom_call.1} parent=1 // pred_region
      %s16 = ssub.s32 128, 128
      %17 = vsyncadd [#allocation3], %s16
      %s19 = sshll.u32 [#allocation2], 4
      %s20 = int_to_ptr.vmem [resolvable:$true] %s19
      %22 = dma.hbm_to_vmem [thread:$0]  %s0, 128, %s20, [#allocation3]
    $region5: #{tpu_custom_call.1} parent=1 // pred_fallthru
      _
    // Predicated region
    $region6: #{tpu_custom_call.1} parent=1 // pred_check
      _
    $region7: #{tpu_custom_call.1} parent=1 // pred_check_branch
      %24 = sbr.rel (0) target = $region9
    $region8: #{tpu_custom_call.1} parent=1 // pred_region
      %s26 = ssub.s32 6144, 6144
      %27 = vsyncadd [#allocation6], %s26
      %s28 = sshll.u32 [#allocation5], 4
      %s29 = int_to_ptr.vmem [resolvable:$true] %s28
      %34 = dma.hbm_to_vmem [thread:$0]  %s1, 6144, %s29, [#allocation6], 128, 128, 8
    $region9: #{tpu_custom_call.1} parent=1 // pred_fallthru
      _
    // Predicated region
    $region10: #{tpu_custom_call.1} parent=1 // pred_check
      _
    $region11: #{tpu_custom_call.1} parent=1 // pred_check_branch
      %36 = sbr.rel (0) target = $region13
    $region12: #{tpu_custom_call.1} parent=1 // pred_region
      %s38 = ssub.s32 128, 128
      %39 = vsyncadd [#allocation6], %s38
      %s41 = sshll.u32 [#allocation7], 4
      %s42 = int_to_ptr.vmem [resolvable:$true] %s41
      %44 = dma.hbm_to_vmem [thread:$0]  %s2, 128, %s42, [#allocation6]
    $region13: #{tpu_custom_call.1} parent=1 // pred_fallthru
      _
    // Predicated region
    $region14: #{tpu_custom_call.1} parent=1 // pred_check
      _
    $region15: #{tpu_custom_call.1} parent=1 // pred_check_branch
      %46 = sbr.rel (0) target = $region17
    $region16: #{tpu_custom_call.1} parent=1 // pred_region
      %47 = dma.done [#allocation3], 128
    $region17: #{tpu_custom_call.1} parent=1 // pred_fallthru
      _
    // Predicated region
    $region18: #{tpu_custom_call.1} parent=1 // pred_check
      _
    $region19: #{tpu_custom_call.1} parent=1 // pred_check_branch
      %49 = sbr.rel (0) target = $region21
    $region20: #{tpu_custom_call.1} parent=1 // pred_region
      %50 = dma.done [#allocation6], 6144
    $region21: #{tpu_custom_call.1} parent=1 // pred_fallthru
      _
    // Predicated region
    $region22: #{tpu_custom_call.1} parent=1 // pred_check
      _
    $region23: #{tpu_custom_call.1} parent=1 // pred_check_branch
      %52 = sbr.rel (0) target = $region25
    $region24: #{tpu_custom_call.1} parent=1 // pred_region
      %53 = dma.done [#allocation6], 128
    $region25: #{tpu_custom_call.1} parent=1 // pred_fallthru
      _
    %v54 = vld [vmem:[#allocation2] sm:$0xff]
    %v55 = vld [vmem:[#allocation5] sm:$0xff]
    %v56 = vld [vmem:[#allocation5 + $0x8] sm:$0xff]
    %v57 = vld [vmem:[#allocation5 + $0x10] sm:$0xff]
    %v58 = vld [vmem:[#allocation5 + $0x18] sm:$0xff]
    %v59 = vld [vmem:[#allocation5 + $0x20] sm:$0xff]
    %v60 = vld [vmem:[#allocation5 + $0x28] sm:$0xff]
    %v61 = vld [vmem:[#allocation5 + $0x30] sm:$0xff]
    %v62 = vld [vmem:[#allocation5 + $0x38] sm:$0xff]
    %v63 = vld [vmem:[#allocation5 + $0x40] sm:$0xff]
    %v64 = vld [vmem:[#allocation5 + $0x48] sm:$0xff]
    %v65 = vld [vmem:[#allocation5 + $0x50] sm:$0xff]
    %v66 = vld [vmem:[#allocation5 + $0x58] sm:$0xff]
    %v67 = vld [vmem:[#allocation5 + $0x60] sm:$0xff]
    %v68 = vld [vmem:[#allocation5 + $0x68] sm:$0xff]
    %v69 = vld [vmem:[#allocation5 + $0x70] sm:$0xff]
    %v70 = vld [vmem:[#allocation5 + $0x78] sm:$0xff]
    %71 = vmatprep.subr.mxu0 0.0
    %72 = vmatpush1.msra.mxu0 %v55
    %73 = vmatprep.subr.mxu0 0.0
    %74 = vmatpush1.msra.mxu0 %v56
    %75 = vmatprep.subr.mxu0 0.0
    %76 = vmatpush1.msra.mxu0 %v57
    %77 = vmatprep.subr.mxu0 0.0
    %78 = vmatpush1.msra.mxu0 %v58
    %79 = vmatprep.subr.mxu0 0.0
    %80 = vmatpush1.msra.mxu0 %v59
    %81 = vmatprep.subr.mxu0 0.0
    %82 = vmatpush1.msra.mxu0 %v60
    %83 = vmatprep.subr.mxu0 0.0
    %84 = vmatpush1.msra.mxu0 %v61
    %85 = vmatprep.subr.mxu0 0.0
    %86 = vmatpush1.msra.mxu0 %v62
    %87 = vmatprep.subr.mxu0 0.0
    %88 = vmatpush1.msra.mxu0 %v63
    %89 = vmatprep.subr.mxu0 0.0
    %90 = vmatpush1.msra.mxu0 %v64
    %91 = vmatprep.subr.mxu0 0.0
    %92 = vmatpush1.msra.mxu0 %v65
    %93 = vmatprep.subr.mxu0 0.0
    %94 = vmatpush1.msra.mxu0 %v66
    %95 = vmatprep.subr.mxu0 0.0
    %96 = vmatpush1.msra.mxu0 %v67
    %97 = vmatprep.subr.mxu0 0.0
    %98 = vmatpush1.msra.mxu0 %v68
    %99 = vmatprep.subr.mxu0 0.0
    %100 = vmatpush1.msra.mxu0 %v69
    %101 = vmatprep.subr.mxu0 0.0
    %102 = vmatpush1.msra.mxu0 %v70
    %103 = vmatprep.subr.mxu0 0.0
    %104 = vmatpush1.msra.mxu0 0.0
    %105 = vmatprep.subr.mxu0 0.0
    %106 = vmatpush1.msra.mxu0 0.0
    %107 = vmatprep.subr.mxu0 0.0
    %108 = vmatpush1.msra.mxu0 0.0
    %109 = vmatprep.subr.mxu0 0.0
    %110 = vmatpush1.msra.mxu0 0.0
    %111 = vmatprep.subr.mxu0 0.0
    %112 = vmatpush1.msra.mxu0 0.0
    %113 = vmatprep.subr.mxu0 0.0
    %114 = vmatpush1.msra.mxu0 0.0
    %115 = vmatprep.subr.mxu0 0.0
    %116 = vmatpush1.msra.mxu0 0.0
    %117 = vmatprep.subr.mxu0 0.0
    %118 = vmatpush1.msra.mxu0 0.0
    %119 = vmatprep.subr.mxu0 0.0
    %120 = vmatpush1.msra.mxu0 0.0
    %121 = vmatprep.subr.mxu0 0.0
    %122 = vmatpush1.msra.mxu0 0.0
    %123 = vmatprep.subr.mxu0 0.0
    %124 = vmatpush1.msra.mxu0 0.0
    %125 = vmatprep.subr.mxu0 0.0
    %126 = vmatpush1.msra.mxu0 0.0
    %127 = vmatprep.subr.mxu0 0.0
    %128 = vmatpush1.msra.mxu0 0.0
    %129 = vmatprep.subr.mxu0 0.0
    %130 = vmatpush1.msra.mxu0 0.0
    %131 = vmatprep.subr.mxu0 0.0
    %132 = vmatpush1.msra.mxu0 0.0
    %133 = vmatprep.subr.mxu0 0.0
    %134 = vmatpush1.msra.mxu0 0.0
    %135 = vmatprep.mubr.f32.mxu0 0.0
    %136 = vmatmul.mubr.f32.gmra.mrb[0].mxu0 %v54
    %v137 = vpop.f32.mrb[0].mxu0
    %v138 = vadd.f32 0.0, %v137
    %v139 = vpop.f32.mrb[0].mxu0
    %140 = vdwg.mxu0
    %v141 = vrot.slane %v138, 4
    %v142 = vadd.f32 %v138, %v141
    %v143 = vrot.slane %v142, 2
    %v144 = vadd.f32 %v142, %v143
    %v145 = vrot.slane %v144, 1
    %v146 = vadd.f32 %v144, %v145
    %v147 = vmul.f32 %v138, %v138
    %v148 = vrot.slane %v147, 4
    %v149 = vadd.f32 %v147, %v148
    %v150 = vrot.slane %v149, 2
    %v151 = vadd.f32 %v149, %v150
    %v152 = vrot.slane %v151, 1
    %v153 = vadd.f32 %v151, %v152
    %v154 = vld [vmem:[#allocation7] sm:$0x1]
    %v155 = vld [vmem:[#allocation7 + $0x3] sm:$0x1]
    %v156 = vmul.f32 %v146, 0.125
    %v157 = vmul.f32 %v153, 0.125
    %v158 = vmul.f32 %v156, %v156
    %v159 = vsub.f32 %v157, %v158
    %v160 = vmax.f32 %v159, 0.0
    %v161 = vadd.f32 %v160, 1e-05
    %v162 = vrsqrt.pop %v161
    %v163 = vmul.f32 %v154, %v162
    %v164 = vmul.f32 %v156, %v163
    %v165 = vsub.f32 %v155, %v164
    %v166 = vlaneseq
    %v167 = vshrl.u32 %v166, 7
    %v168 = vsub.s32 0, %v167
    %v169 = vrot.slane %v163, %v168
    %v170 = vmul.f32 %v138, %v169
    %v171 = vlaneseq
    %v172 = vshrl.u32 %v171, 7
    %v173 = vsub.s32 0, %v172
    %v174 = vrot.slane %v165, %v173
    %v175 = vadd.f32 %v170, %v174
    %v176 = vmax.f32 %v175, 0.0
    %s177 = scalar_lea.vmem [#allocation5], 128
    %v178 = vld [vmem:[%s177] sm:$0xff]
    %v179 = vld [vmem:[%s177 + $0x8] sm:$0xff]
    %v180 = vld [vmem:[%s177 + $0x10] sm:$0xff]
    %v181 = vld [vmem:[%s177 + $0x18] sm:$0xff]
    %v182 = vld [vmem:[%s177 + $0x20] sm:$0xff]
    %v183 = vld [vmem:[%s177 + $0x28] sm:$0xff]
    %v184 = vld [vmem:[%s177 + $0x30] sm:$0xff]
    %v185 = vld [vmem:[%s177 + $0x38] sm:$0xff]
    %v186 = vld [vmem:[%s177 + $0x40] sm:$0xff]
    %v187 = vld [vmem:[%s177 + $0x48] sm:$0xff]
    %v188 = vld [vmem:[%s177 + $0x50] sm:$0xff]
    %v189 = vld [vmem:[%s177 + $0x58] sm:$0xff]
    %v190 = vld [vmem:[%s177 + $0x60] sm:$0xff]
    %v191 = vld [vmem:[%s177 + $0x68] sm:$0xff]
    %v192 = vld [vmem:[%s177 + $0x70] sm:$0xff]
    %v193 = vld [vmem:[%s177 + $0x78] sm:$0xff]
    %194 = vmatprep.subr.mxu0 0.0
    %195 = vmatpush1.msra.mxu0 %v178
    %196 = vmatprep.subr.mxu0 0.0
    %197 = vmatpush1.msra.mxu0 %v179
    %198 = vmatprep.subr.mxu0 0.0
    %199 = vmatpush1.msra.mxu0 %v180
    %200 = vmatprep.subr.mxu0 0.0
    %201 = vmatpush1.msra.mxu0 %v181
    %202 = vmatprep.subr.mxu0 0.0
    %203 = vmatpush1.msra.mxu0 %v182
    %204 = vmatprep.subr.mxu0 0.0
    %205 = vmatpush1.msra.mxu0 %v183
    %206 = vmatprep.subr.mxu0 0.0
    %207 = vmatpush1.msra.mxu0 %v184
    %208 = vmatprep.subr.mxu0 0.0
    %209 = vmatpush1.msra.mxu0 %v185
    %210 = vmatprep.subr.mxu0 0.0
    %211 = vmatpush1.msra.mxu0 %v186
    %212 = vmatprep.subr.mxu0 0.0
    %213 = vmatpush1.msra.mxu0 %v187
    %214 = vmatprep.subr.mxu0 0.0
    %215 = vmatpush1.msra.mxu0 %v188
    %216 = vmatprep.subr.mxu0 0.0
    %217 = vmatpush1.msra.mxu0 %v189
    %218 = vmatprep.subr.mxu0 0.0
    %219 = vmatpush1.msra.mxu0 %v190
    %220 = vmatprep.subr.mxu0 0.0
    %221 = vmatpush1.msra.mxu0 %v191
    %222 = vmatprep.subr.mxu0 0.0
    %223 = vmatpush1.msra.mxu0 %v192
    %224 = vmatprep.subr.mxu0 0.0
    %225 = vmatpush1.msra.mxu0 %v193
    %226 = vmatprep.subr.mxu0 0.0
    %227 = vmatpush1.msra.mxu0 0.0
    %228 = vmatprep.subr.mxu0 0.0
    %229 = vmatpush1.msra.mxu0 0.0
    %230 = vmatprep.subr.mxu0 0.0
    %231 = vmatpush1.msra.mxu0 0.0
    %232 = vmatprep.subr.mxu0 0.0
    %233 = vmatpush1.msra.mxu0 0.0
    %234 = vmatprep.subr.mxu0 0.0
    %235 = vmatpush1.msra.mxu0 0.0
    %236 = vmatprep.subr.mxu0 0.0
    %237 = vmatpush1.msra.mxu0 0.0
    %238 = vmatprep.subr.mxu0 0.0
    %239 = vmatpush1.msra.mxu0 0.0
    %240 = vmatprep.subr.mxu0 0.0
    %241 = vmatpush1.msra.mxu0 0.0
    %242 = vmatprep.subr.mxu0 0.0
    %243 = vmatpush1.msra.mxu0 0.0
    %244 = vmatprep.subr.mxu0 0.0
    %245 = vmatpush1.msra.mxu0 0.0
    %246 = vmatprep.subr.mxu0 0.0
    %247 = vmatpush1.msra.mxu0 0.0
    %248 = vmatprep.subr.mxu0 0.0
    %249 = vmatpush1.msra.mxu0 0.0
    %250 = vmatprep.subr.mxu0 0.0
    %251 = vmatpush1.msra.mxu0 0.0
    %252 = vmatprep.subr.mxu0 0.0
    %253 = vmatpush1.msra.mxu0 0.0
    %254 = vmatprep.subr.mxu0 0.0
    %255 = vmatpush1.msra.mxu0 0.0
    %256 = vmatprep.subr.mxu0 0.0
    %257 = vmatpush1.msra.mxu0 0.0
    %258 = vmatprep.mubr.f32.mxu0 0.0
    %259 = vmatmul.mubr.f32.gmra.mrb[0].mxu0 %v176
    %v260 = vpop.f32.mrb[0].mxu0
    %v261 = vadd.f32 0.0, %v260
    %v262 = vpop.f32.mrb[0].mxu0
    %263 = vdwg.mxu0
    %v264 = vrot.slane %v261, 4
    %v265 = vadd.f32 %v261, %v264
    %v266 = vrot.slane %v265, 2
    %v267 = vadd.f32 %v265, %v266
    %v268 = vrot.slane %v267, 1
    %v269 = vadd.f32 %v267, %v268
    %v270 = vmul.f32 %v261, %v261
    %v271 = vrot.slane %v270, 4
    %v272 = vadd.f32 %v270, %v271
    %v273 = vrot.slane %v272, 2
    %v274 = vadd.f32 %v272, %v273
    %v275 = vrot.slane %v274, 1
    %v276 = vadd.f32 %v274, %v275
    %v277 = vld [vmem:[#allocation7 + $0x1] sm:$0x1]
    %v278 = vld [vmem:[#allocation7 + $0x4] sm:$0x1]
    %v279 = vmul.f32 %v269, 0.125
    %v280 = vmul.f32 %v276, 0.125
    %v281 = vmul.f32 %v279, %v279
    %v282 = vsub.f32 %v280, %v281
    %v283 = vmax.f32 %v282, 0.0
    %v284 = vadd.f32 %v283, 1e-05
    %v285 = vrsqrt.pop %v284
    %v286 = vmul.f32 %v277, %v285
    %v287 = vmul.f32 %v279, %v286
    %v288 = vsub.f32 %v278, %v287
    %v289 = vlaneseq
    %v290 = vshrl.u32 %v289, 7
    %v291 = vsub.s32 0, %v290
    %v292 = vrot.slane %v286, %v291
    %v293 = vmul.f32 %v261, %v292
    %v294 = vlaneseq
    %v295 = vshrl.u32 %v294, 7
    %v296 = vsub.s32 0, %v295
    %v297 = vrot.slane %v288, %v296
    %v298 = vadd.f32 %v293, %v297
    %v299 = vmax.f32 %v298, 0.0
    %s300 = scalar_lea.vmem [#allocation5], 256
    %v301 = vld [vmem:[%s300] sm:$0xff]
    %v302 = vld [vmem:[%s300 + $0x8] sm:$0xff]
    %v303 = vld [vmem:[%s300 + $0x10] sm:$0xff]
    %v304 = vld [vmem:[%s300 + $0x18] sm:$0xff]
    %v305 = vld [vmem:[%s300 + $0x20] sm:$0xff]
    %v306 = vld [vmem:[%s300 + $0x28] sm:$0xff]
    %v307 = vld [vmem:[%s300 + $0x30] sm:$0xff]
    %v308 = vld [vmem:[%s300 + $0x38] sm:$0xff]
    %v309 = vld [vmem:[%s300 + $0x40] sm:$0xff]
    %v310 = vld [vmem:[%s300 + $0x48] sm:$0xff]
    %v311 = vld [vmem:[%s300 + $0x50] sm:$0xff]
    %v312 = vld [vmem:[%s300 + $0x58] sm:$0xff]
    %v313 = vld [vmem:[%s300 + $0x60] sm:$0xff]
    %v314 = vld [vmem:[%s300 + $0x68] sm:$0xff]
    %v315 = vld [vmem:[%s300 + $0x70] sm:$0xff]
    %v316 = vld [vmem:[%s300 + $0x78] sm:$0xff]
    %317 = vmatprep.subr.mxu0 0.0
    %318 = vmatpush1.msra.mxu0 %v301
    %319 = vmatprep.subr.mxu0 0.0
    %320 = vmatpush1.msra.mxu0 %v302
    %321 = vmatprep.subr.mxu0 0.0
    %322 = vmatpush1.msra.mxu0 %v303
    %323 = vmatprep.subr.mxu0 0.0
    %324 = vmatpush1.msra.mxu0 %v304
    %325 = vmatprep.subr.mxu0 0.0
    %326 = vmatpush1.msra.mxu0 %v305
    %327 = vmatprep.subr.mxu0 0.0
    %328 = vmatpush1.msra.mxu0 %v306
    %329 = vmatprep.subr.mxu0 0.0
    %330 = vmatpush1.msra.mxu0 %v307
    %331 = vmatprep.subr.mxu0 0.0
    %332 = vmatpush1.msra.mxu0 %v308
    %333 = vmatprep.subr.mxu0 0.0
    %334 = vmatpush1.msra.mxu0 %v309
    %335 = vmatprep.subr.mxu0 0.0
    %336 = vmatpush1.msra.mxu0 %v310
    %337 = vmatprep.subr.mxu0 0.0
    %338 = vmatpush1.msra.mxu0 %v311
    %339 = vmatprep.subr.mxu0 0.0
    %340 = vmatpush1.msra.mxu0 %v312
    %341 = vmatprep.subr.mxu0 0.0
    %342 = vmatpush1.msra.mxu0 %v313
    %343 = vmatprep.subr.mxu0 0.0
    %344 = vmatpush1.msra.mxu0 %v314
    %345 = vmatprep.subr.mxu0 0.0
    %346 = vmatpush1.msra.mxu0 %v315
    %347 = vmatprep.subr.mxu0 0.0
    %348 = vmatpush1.msra.mxu0 %v316
    %349 = vmatprep.subr.mxu0 0.0
    %350 = vmatpush1.msra.mxu0 0.0
    %351 = vmatprep.subr.mxu0 0.0
    %352 = vmatpush1.msra.mxu0 0.0
    %353 = vmatprep.subr.mxu0 0.0
    %354 = vmatpush1.msra.mxu0 0.0
    %355 = vmatprep.subr.mxu0 0.0
    %356 = vmatpush1.msra.mxu0 0.0
    %357 = vmatprep.subr.mxu0 0.0
    %358 = vmatpush1.msra.mxu0 0.0
    %359 = vmatprep.subr.mxu0 0.0
    %360 = vmatpush1.msra.mxu0 0.0
    %361 = vmatprep.subr.mxu0 0.0
    %362 = vmatpush1.msra.mxu0 0.0
    %363 = vmatprep.subr.mxu0 0.0
    %364 = vmatpush1.msra.mxu0 0.0
    %365 = vmatprep.subr.mxu0 0.0
    %366 = vmatpush1.msra.mxu0 0.0
    %367 = vmatprep.subr.mxu0 0.0
    %368 = vmatpush1.msra.mxu0 0.0
    %369 = vmatprep.subr.mxu0 0.0
    %370 = vmatpush1.msra.mxu0 0.0
    %371 = vmatprep.subr.mxu0 0.0
    %372 = vmatpush1.msra.mxu0 0.0
    %373 = vmatprep.subr.mxu0 0.0
    %374 = vmatpush1.msra.mxu0 0.0
    %375 = vmatprep.subr.mxu0 0.0
    %376 = vmatpush1.msra.mxu0 0.0
    %377 = vmatprep.subr.mxu0 0.0
    %378 = vmatpush1.msra.mxu0 0.0
    %379 = vmatprep.subr.mxu0 0.0
    %380 = vmatpush1.msra.mxu0 0.0
    %381 = vmatprep.mubr.f32.mxu0 0.0
    %382 = vmatmul.mubr.f32.gmra.mrb[0].mxu0 %v299
    %v383 = vpop.f32.mrb[0].mxu0
    %v384 = vadd.f32 0.0, %v383
    %v385 = vpop.f32.mrb[0].mxu0
    %386 = vdwg.mxu0
    %v387 = vrot.slane %v384, 4
    %v388 = vadd.f32 %v384, %v387
    %v389 = vrot.slane %v388, 2
    %v390 = vadd.f32 %v388, %v389
    %v391 = vrot.slane %v390, 1
    %v392 = vadd.f32 %v390, %v391
    %393 = vst [vmem:[#allocation8] sm:$0x1] %v392
    %v394 = vmul.f32 %v384, %v384
    %v395 = vrot.slane %v394, 4
    %v396 = vadd.f32 %v394, %v395
    %v397 = vrot.slane %v396, 2
    %v398 = vadd.f32 %v396, %v397
    %v399 = vrot.slane %v398, 1
    %v400 = vadd.f32 %v398, %v399
    %401 = vst [vmem:[#allocation8 + $0x1] sm:$0x1] %v400
    %vm402 = vcmask 7168
    %403 = vst.msk [vmem:[%s3] sm:$0xff] %vm402, %v384
    // Predicated region
    $region26: #{tpu_custom_call.1} parent=1 // pred_check
      _
    $region27: #{tpu_custom_call.1} parent=1 // pred_check_branch
      %405 = sbr.rel (0) target = $region29
    $region28: #{tpu_custom_call.1} parent=1 // pred_region
      _
    $region29: #{tpu_custom_call.1} parent=1 // pred_fallthru
      _
    // Predicated region
    $region30: #{tpu_custom_call.1} parent=1 // pred_check
      _
    $region31: #{tpu_custom_call.1} parent=1 // pred_check_branch
      %407 = sbr.rel (0) target = $region33
    $region32: #{tpu_custom_call.1} parent=1 // pred_region
      %s409 = ssub.s32 32, 32
      %410 = vsyncadd [#allocation4], %s409
      %s412 = sshll.u32 [#allocation8], 4
      %s413 = int_to_ptr.vmem [resolvable:$true] %s412
      %415 = dma.vmem_to_hbm [thread:$0]  %s413, 32, %s4, [#allocation4]
    $region33: #{tpu_custom_call.1} parent=1 // pred_fallthru
      _
    // Predicated region
    $region34: #{tpu_custom_call.1} parent=1 // pred_check
      _
    $region35: #{tpu_custom_call.1} parent=1 // pred_check_branch
      %417 = sbr.rel (0) target = $region37
    $region36: #{tpu_custom_call.1} parent=1 // pred_region
      _
    $region37: #{tpu_custom_call.1} parent=1 // pred_fallthru
      _
    // Predicated region
    $region38: #{tpu_custom_call.1} parent=1 // pred_check
      _
    $region39: #{tpu_custom_call.1} parent=1 // pred_check_branch
      %419 = sbr.rel (0) target = $region41
    $region40: #{tpu_custom_call.1} parent=1 // pred_region
      %420 = dma.done [#allocation4], 32
    $region41: #{tpu_custom_call.1} parent=1 // pred_fallthru
      _
    %421 = vsyncpa [#allocation3], 1
    %422 = vsyncpa [#allocation6], 1
    %423 = vsyncpa [#allocation4], 1

</llo_original>
